<compile_context>
chip_gen: v7x
topology: tpu7x:2x2x1
jax: 0.10.0
libtpu: 0.0.40
codegen_flags: <defaults>
</compile_context>

<pallas_src>
import functools

import jax
import jax.numpy as jnp
from jax.experimental import pallas as pl
from jax.experimental.pallas import tpu as pltpu

BN_EPS = 1e-5


def temporal_pooling_kernel(x_ref, wck_ref, bias_ref, scale_ref, shift_ref,
                            gmask_ref, iw_ref, o_ref, *,
                            kernel_size, pool_offsets, batch_block):
    # x_ref:     (bb, C_in, L)    VMEM  original NCL layout, lane-dense L
    # wck_ref:   (C_out, C_in)    VMEM  conv weight with 1/k folded in
    # bias_ref:  (C_out, 1)       VMEM  conv bias (f32)
    # scale_ref: (C_out, 1)       VMEM  gamma * rsqrt(var + eps)
    # shift_ref: (C_out, 1)       VMEM  beta - mean * scale
    # gmask_ref: (max(2k-2,1), L) VMEM  same-pool-group masks per lane offset
    # iw_ref:    (3, L)           VMEM  interp weights for taps at -k, 0, +k
    # o_ref:     (bb, C_out, L)   VMEM  output block
    k = kernel_size
    L = x_ref.shape[-1]

    wck = wck_ref[...]
    bias = bias_ref[...]
    scale = scale_ref[...]
    shift = shift_ref[...]
    gmask = gmask_ref[...]
    iw = iw_ref[...]
    w_prev = iw[0:1, :]          # weight on the previous pooled group (a[j-k])
    w_self = iw[1:2, :]          # weight on this pooled group        (a[j])
    w_next = iw[2:3, :]          # weight on the next pooled group    (a[j+k])

    for i in range(batch_block):
        xb = x_ref[i]                                               # (C_in, L)

        # 1x1 conv at full length; ONE MXU contraction over C_in (1/k folded
        # into wck, so this already carries the AvgPool scaling).
        u = jnp.dot(wck, xb, preferred_element_type=jnp.float32)   # (C_out, L)

        # AvgPool1d(k, stride=k) broadcast back to full length: sum the other
        # members of each k-group via masked lane rolls (wrap lanes masked).
        pooled = u
        for t, d in enumerate(pool_offsets):
            pooled = pooled + gmask[t:t + 1, :] * pltpu.roll(
                u, shift=(-d) % L, axis=1)

        # ReLU then BatchNorm1d inference affine (single vmul + vadd).
        a = jnp.maximum(pooled + bias, 0.0) * scale + shift        # (C_out, L)

        # interpolate(mode='linear', align_corners=True): two-tap mix of the
        # neighbouring pooled groups, which live at lane offsets +-k.  Wrap
        # positions carry zero weight by construction.  Dropout = identity.
        out = w_self * a
        if k > 1:
            out = out + w_prev * pltpu.roll(a, shift=k % L, axis=1)
            out = out + w_next * pltpu.roll(a, shift=(-k) % L, axis=1)

        o_ref[i] = out.astype(o_ref.dtype)        # lane-dense (C_out, L) store


def temporal_pooling(x, conv_w, conv_b, bn_gamma, bn_beta, bn_mean, bn_var,
                     kernel_size=2, compute_dtype=None, batch_block=None):
    """TemporalPooling eval-mode forward. x: (N, C_in, L), NCL layout."""
    N, C_in, L = x.shape
    k = int(kernel_size)
    assert k >= 1
    assert L % k == 0, "length must be divisible by kernel_size"
    Lh = L // k
    L_out = Lh * k                      # == L
    C_out = conv_w.shape[0]
    if compute_dtype is None:
        compute_dtype = x.dtype         # use jnp.bfloat16 on v6e/v7x for 2x BW

    x_c = x if x.dtype == compute_dtype else x.astype(compute_dtype)
    wck = (conv_w.astype(jnp.float32) / float(k)).astype(compute_dtype)

    # --- fold BatchNorm1d (running stats) into one affine, in f32 -----------
    scale = (bn_gamma.astype(jnp.float32)
             * jax.lax.rsqrt(bn_var.astype(jnp.float32) + BN_EPS))
    shift = bn_beta.astype(jnp.float32) - bn_mean.astype(jnp.float32) * scale
    bias = conv_b.astype(jnp.float32)[:, None]                     # (C_out, 1)
    scale = scale[:, None]
    shift = shift[:, None]

    # --- masks: which lane offsets belong to the same AvgPool group ---------
    pool_offsets = tuple(d for d in range(-(k - 1), k) if d != 0)
    jj = jnp.arange(L)
    if pool_offsets:
        rows = []
        for d in pool_offsets:
            jd = jj + d
            ok = (jd >= 0) & (jd < L) & ((jd // k) == (jj // k))
            rows.append(ok.astype(jnp.float32))
        gmask = jnp.stack(rows, axis=0)                 # (2k-2, L)
    else:
        gmask = jnp.zeros((1, L), jnp.float32)          # k == 1: unused

    # --- two-tap align_corners=True interp weights (offsets -1, 0, +1 pooled
    # groups, expressed at full output resolution) ----------------------------
    if L_out == 1:
        iw = jnp.array([[0.0], [1.0], [0.0]], jnp.float32)
    else:
        jf = jnp.arange(L_out, dtype=jnp.float32)
        src = jf * (Lh - 1) / (L_out - 1)
        i0 = jnp.floor(src).astype(jnp.int32)
        i1 = jnp.minimum(i0 + 1, Lh - 1)
        frac = src - i0.astype(jnp.float32)
        q = jj // k                                     # i0 - q in {-1, 0}
        iw = jnp.zeros((3, L_out), jnp.float32)
        iw = iw.at[i0 - q + 1, jj].add(1.0 - frac)
        iw = iw.at[i1 - q + 1, jj].add(frac)

    # --- batch blocking: big enough to amortize per-step overhead, small
    # enough to double-buffer comfortably; keep >=2 parallel steps for v7x ----
    out_dtype = x.dtype
    itemsize_in = jnp.dtype(compute_dtype).itemsize
    itemsize_out = jnp.dtype(out_dtype).itemsize
    if batch_block is None:
        per_elem = L * (C_in * itemsize_in + C_out * itemsize_out
                        + 6 * C_out * 4)
        budget = 8 * 1024 * 1024
        bb = max(1, min(N, budget // max(per_elem, 1)))
        while bb > 1 and (N // bb) < 2:
            bb -= 1
        while N % bb != 0:
            bb -= 1
    else:
        bb = int(batch_block)
        assert N % bb == 0
    grid = (N // bb,)

    # --- scoped VMEM: size from the real working set, with headroom, capped
    # well under v7x's 64 MiB physical -----------------------------------------
    aux_bytes = (gmask.size + iw.size) * 4 + (3 * C_out + C_out * C_in) * 4
    work_bytes = (2 * bb * L * (C_in * itemsize_in + C_out * itemsize_out)
                  + 2 * aux_bytes)
    vmem_limit = int(min(max(4 * work_bytes, 32 * 1024 * 1024),
                         48 * 1024 * 1024))

    kernel = functools.partial(
        temporal_pooling_kernel, kernel_size=k,
        pool_offsets=pool_offsets, batch_block=bb)

    return pl.pallas_call(
        kernel,
        out_shape=jax.ShapeDtypeStruct((N, C_out, L_out), out_dtype),
        grid=grid,
        in_specs=[
            # NOTE: if DMA is still exposed on huge inputs, bump this spec to
            # pipeline_mode=pl.Buffered(3); constants keep the default depth.
            pl.BlockSpec((bb, C_in, L), lambda n: (n, 0, 0)),
            pl.BlockSpec((C_out, C_in), lambda n: (0, 0)),
            pl.BlockSpec((C_out, 1), lambda n: (0, 0)),
            pl.BlockSpec((C_out, 1), lambda n: (0, 0)),
            pl.BlockSpec((C_out, 1), lambda n: (0, 0)),
            pl.BlockSpec((gmask.shape[0], L), lambda n: (0, 0)),
            pl.BlockSpec((3, L_out), lambda n: (0, 0)),
        ],
        out_specs=pl.BlockSpec((bb, C_out, L_out), lambda n: (n, 0, 0)),
        compiler_params=pltpu.CompilerParams(
            dimension_semantics=("parallel",),
            vmem_limit_bytes=vmem_limit,
        ),
    )(x_c, wck, bias, scale, shift, gmask, iw)


def temporal_pooling_ref(x, conv_w, conv_b, bn_gamma, bn_beta, bn_mean, bn_var,
                         kernel_size=2):
    """Pure-JAX reference of the PyTorch eval-mode forward."""
    N, C, L = x.shape
    k = kernel_size
    Lh = L // k
    L_out = Lh * k
    pooled = x.reshape(N, C, Lh, k).mean(-1)
    y = jnp.einsum('oc,nch->noh', conv_w, pooled) + conv_b[None, :, None]
    y = jnp.maximum(y, 0.0)
    z = (bn_gamma[None, :, None] * (y - bn_mean[None, :, None])
         / jnp.sqrt(bn_var[None, :, None] + BN_EPS) + bn_beta[None, :, None])
    if L_out == 1:
        return z
    j = jnp.arange(L_out, dtype=jnp.float32)
    src = j * (Lh - 1) / (L_out - 1)
    i0 = jnp.floor(src).astype(jnp.int32)
    i1 = jnp.minimum(i0 + 1, Lh - 1)
    frac = src - i0.astype(jnp.float32)
    return z[:, :, i0] * (1.0 - frac) + z[:, :, i1] * frac


if __name__ == "__main__":
    # Deterministic synthetic inputs / parameters (no checkpoint load).
    key = jax.random.PRNGKey(0)
    kx, kw, kb, kg, kbt, km, kv = jax.random.split(key, 7)

    # Module defaults (in=3, out=1, k=2); L=256 keeps lanes 128-aligned so
    # stores are full (unmasked) vst and the rolls hit the aligned fast path.
    N, C_in, C_out, L, kernel_size = 4, 3, 1, 256, 2

    x = jax.random.normal(kx, (N, C_in, L), jnp.float32)
    conv_w = 0.5 * jax.random.normal(kw, (C_out, C_in), jnp.float32)
    conv_b = 0.1 * jax.random.normal(kb, (C_out,), jnp.float32)
    bn_gamma = 1.0 + 0.1 * jax.random.normal(kg, (C_out,), jnp.float32)
    bn_beta = 0.1 * jax.random.normal(kbt, (C_out,), jnp.float32)
    bn_mean = 0.1 * jax.random.normal(km, (C_out,), jnp.float32)
    bn_var = 0.5 + jnp.abs(jax.random.normal(kv, (C_out,), jnp.float32))

    out = temporal_pooling(x, conv_w, conv_b, bn_gamma, bn_beta, bn_mean,
                           bn_var, kernel_size=kernel_size)
    out = jax.block_until_ready(out)

    ref = temporal_pooling_ref(x, conv_w, conv_b, bn_gamma, bn_beta, bn_mean,
                               bn_var, kernel_size=kernel_size)
    err = float(jnp.max(jnp.abs(out - ref)))
    L_out = (L // kernel_size) * kernel_size
    assert out.shape == (N, C_out, L_out), out.shape
    assert err < 1e-4, f"max abs error {err}"
    print("KERNEL_OK")
</pallas_src>

<mosaic_0001>
module attributes {stable_mosaic.version = 11 : i64} {
  func.func @temporal_pooling_kernel(%arg0: i32, %arg1: memref<2x3x256xf32, #tpu.memory_space<vmem>>, %arg2: memref<1x3xf32, #tpu.memory_space<vmem>>, %arg3: memref<1x1xf32, #tpu.memory_space<vmem>>, %arg4: memref<1x1xf32, #tpu.memory_space<vmem>>, %arg5: memref<1x1xf32, #tpu.memory_space<vmem>>, %arg6: memref<2x256xf32, #tpu.memory_space<vmem>>, %arg7: memref<3x256xf32, #tpu.memory_space<vmem>>, %arg8: memref<2x1x256xf32, #tpu.memory_space<vmem>>) attributes {dimension_semantics = [#tpu.dimension_semantics<parallel>], iteration_bounds = array<i64: 2>, scalar_prefetch = 0 : i64, scratch_operands = 0 : i64, tpu.core_type = #tpu.core_type<tc>, window_params = [{transform_indices = @transform_0, window_bounds = array<i64: 2, 3, 256>}, {pipeline_mode = #tpu.pipeline_mode<synchronous>, transform_indices = @transform_1, window_bounds = array<i64: 1, 3>}, {pipeline_mode = #tpu.pipeline_mode<synchronous>, transform_indices = @transform_2, window_bounds = array<i64: 1, 1>}, {pipeline_mode = #tpu.pipeline_mode<synchronous>, transform_indices = @transform_3, window_bounds = array<i64: 1, 1>}, {pipeline_mode = #tpu.pipeline_mode<synchronous>, transform_indices = @transform_4, window_bounds = array<i64: 1, 1>}, {pipeline_mode = #tpu.pipeline_mode<synchronous>, transform_indices = @transform_5, window_bounds = array<i64: 2, 256>}, {pipeline_mode = #tpu.pipeline_mode<synchronous>, transform_indices = @transform_6, window_bounds = array<i64: 3, 256>}, {transform_indices = @transform_7, window_bounds = array<i64: 2, 1, 256>}]} {
    %c0 = arith.constant 0 : index
    %c0_0 = arith.constant 0 : index
    %0 = vector.load %arg2[%c0, %c0_0] : memref<1x3xf32, #tpu.memory_space<vmem>>, vector<1x3xf32>
    %c0_1 = arith.constant 0 : index
    %c0_2 = arith.constant 0 : index
    %1 = vector.load %arg3[%c0_1, %c0_2] : memref<1x1xf32, #tpu.memory_space<vmem>>, vector<1x1xf32>
    %c0_3 = arith.constant 0 : index
    %c0_4 = arith.constant 0 : index
    %2 = vector.load %arg4[%c0_3, %c0_4] : memref<1x1xf32, #tpu.memory_space<vmem>>, vector<1x1xf32>
    %c0_5 = arith.constant 0 : index
    %c0_6 = arith.constant 0 : index
    %3 = vector.load %arg5[%c0_5, %c0_6] : memref<1x1xf32, #tpu.memory_space<vmem>>, vector<1x1xf32>
    %c0_7 = arith.constant 0 : index
    %c0_8 = arith.constant 0 : index
    %4 = vector.load %arg6[%c0_7, %c0_8] : memref<2x256xf32, #tpu.memory_space<vmem>>, vector<2x256xf32>
    %c0_9 = arith.constant 0 : index
    %c0_10 = arith.constant 0 : index
    %5 = vector.load %arg7[%c0_9, %c0_10] : memref<3x256xf32, #tpu.memory_space<vmem>>, vector<3x256xf32>
    %6 = vector.extract_strided_slice %5 {offsets = [0, 0], sizes = [1, 256], strides = [1, 1]} : vector<3x256xf32> to vector<1x256xf32>
    %7 = vector.extract_strided_slice %5 {offsets = [1, 0], sizes = [1, 256], strides = [1, 1]} : vector<3x256xf32> to vector<1x256xf32>
    %8 = vector.extract_strided_slice %5 {offsets = [2, 0], sizes = [1, 256], strides = [1, 1]} : vector<3x256xf32> to vector<1x256xf32>
    %c0_11 = arith.constant 0 : index
    %c0_12 = arith.constant 0 : index
    %c0_13 = arith.constant 0 : index
    %9 = vector.load %arg1[%c0_11, %c0_12, %c0_13] : memref<2x3x256xf32, #tpu.memory_space<vmem>>, vector<1x3x256xf32>
    %10 = vector.shape_cast %9 : vector<1x3x256xf32> to vector<3x256xf32>
    %cst = arith.constant dense<0.000000e+00> : vector<1x256xf32>
    %11 = tpu.matmul %0, %10, %cst {dimension_numbers = #tpu.dot_dimension_numbers<[1], [0], [0], [1], [0, 0, 1, 1], [], []>} : vector<1x3xf32>, vector<3x256xf32>, vector<1x256xf32> -> vector<1x256xf32>
    %12 = vector.extract_strided_slice %4 {offsets = [0, 0], sizes = [1, 256], strides = [1, 1]} : vector<2x256xf32> to vector<1x256xf32>
    %c1_i32 = arith.constant 1 : i32
    %13 = tpu.dynamic_rotate %11 by %c1_i32 dim 1 : vector<1x256xf32>, i32 -> vector<1x256xf32>
    %14 = arith.mulf %12, %13 : vector<1x256xf32>
    %15 = arith.addf %11, %14 : vector<1x256xf32>
    %16 = vector.extract_strided_slice %4 {offsets = [1, 0], sizes = [1, 256], strides = [1, 1]} : vector<2x256xf32> to vector<1x256xf32>
    %c255_i32 = arith.constant 255 : i32
    %17 = tpu.dynamic_rotate %11 by %c255_i32 dim 1 : vector<1x256xf32>, i32 -> vector<1x256xf32>
    %18 = arith.mulf %16, %17 : vector<1x256xf32>
    %19 = arith.addf %15, %18 : vector<1x256xf32>
    %20 = vector.broadcast %1 : vector<1x1xf32> to vector<1x256xf32>
    %21 = arith.addf %19, %20 : vector<1x256xf32>
    %cst_14 = arith.constant 0.000000e+00 : f32
    %22 = vector.broadcast %cst_14 : f32 to vector<1x256xf32>
    %23 = arith.maximumf %21, %22 : vector<1x256xf32>
    %24 = vector.broadcast %2 : vector<1x1xf32> to vector<1x256xf32>
    %25 = arith.mulf %23, %24 : vector<1x256xf32>
    %26 = vector.broadcast %3 : vector<1x1xf32> to vector<1x256xf32>
    %27 = arith.addf %25, %26 : vector<1x256xf32>
    %28 = arith.mulf %7, %27 : vector<1x256xf32>
    %c2_i32 = arith.constant 2 : i32
    %29 = tpu.dynamic_rotate %27 by %c2_i32 dim 1 : vector<1x256xf32>, i32 -> vector<1x256xf32>
    %30 = arith.mulf %6, %29 : vector<1x256xf32>
    %31 = arith.addf %28, %30 : vector<1x256xf32>
    %c254_i32 = arith.constant 254 : i32
    %32 = tpu.dynamic_rotate %27 by %c254_i32 dim 1 : vector<1x256xf32>, i32 -> vector<1x256xf32>
    %33 = arith.mulf %8, %32 : vector<1x256xf32>
    %34 = arith.addf %31, %33 : vector<1x256xf32>
    %c0_15 = arith.constant 0 : index
    %c0_16 = arith.constant 0 : index
    %c0_17 = arith.constant 0 : index
    %35 = vector.load %arg8[%c0_15, %c0_16, %c0_17] : memref<2x1x256xf32, #tpu.memory_space<vmem>>, vector<1x1x256xf32>
    %36 = vector.shape_cast %35 : vector<1x1x256xf32> to vector<1x256xf32>
    %37 = vector.shape_cast %34 : vector<1x256xf32> to vector<1x1x256xf32>
    tpu.vector_store %arg8[%c0_15, %c0_16, %c0_17], %37 {strides = array<i32>} : memref<2x1x256xf32, #tpu.memory_space<vmem>>, vector<1x1x256xf32>,
    %c1 = arith.constant 1 : index
    %c0_18 = arith.constant 0 : index
    %c0_19 = arith.constant 0 : index
    %38 = vector.load %arg1[%c1, %c0_18, %c0_19] : memref<2x3x256xf32, #tpu.memory_space<vmem>>, vector<1x3x256xf32>
    %39 = vector.shape_cast %38 : vector<1x3x256xf32> to vector<3x256xf32>
    %cst_20 = arith.constant dense<0.000000e+00> : vector<1x256xf32>
    %40 = tpu.matmul %0, %39, %cst_20 {dimension_numbers = #tpu.dot_dimension_numbers<[1], [0], [0], [1], [0, 0, 1, 1], [], []>} : vector<1x3xf32>, vector<3x256xf32>, vector<1x256xf32> -> vector<1x256xf32>
    %41 = vector.extract_strided_slice %4 {offsets = [0, 0], sizes = [1, 256], strides = [1, 1]} : vector<2x256xf32> to vector<1x256xf32>
    %c1_i32_21 = arith.constant 1 : i32
    %42 = tpu.dynamic_rotate %40 by %c1_i32_21 dim 1 : vector<1x256xf32>, i32 -> vector<1x256xf32>
    %43 = arith.mulf %41, %42 : vector<1x256xf32>
    %44 = arith.addf %40, %43 : vector<1x256xf32>
    %45 = vector.extract_strided_slice %4 {offsets = [1, 0], sizes = [1, 256], strides = [1, 1]} : vector<2x256xf32> to vector<1x256xf32>
    %c255_i32_22 = arith.constant 255 : i32
    %46 = tpu.dynamic_rotate %40 by %c255_i32_22 dim 1 : vector<1x256xf32>, i32 -> vector<1x256xf32>
    %47 = arith.mulf %45, %46 : vector<1x256xf32>
    %48 = arith.addf %44, %47 : vector<1x256xf32>
    %49 = vector.broadcast %1 : vector<1x1xf32> to vector<1x256xf32>
    %50 = arith.addf %48, %49 : vector<1x256xf32>
    %cst_23 = arith.constant 0.000000e+00 : f32
    %51 = vector.broadcast %cst_23 : f32 to vector<1x256xf32>
    %52 = arith.maximumf %50, %51 : vector<1x256xf32>
    %53 = vector.broadcast %2 : vector<1x1xf32> to vector<1x256xf32>
    %54 = arith.mulf %52, %53 : vector<1x256xf32>
    %55 = vector.broadcast %3 : vector<1x1xf32> to vector<1x256xf32>
    %56 = arith.addf %54, %55 : vector<1x256xf32>
    %57 = arith.mulf %7, %56 : vector<1x256xf32>
    %c2_i32_24 = arith.constant 2 : i32
    %58 = tpu.dynamic_rotate %56 by %c2_i32_24 dim 1 : vector<1x256xf32>, i32 -> vector<1x256xf32>
    %59 = arith.mulf %6, %58 : vector<1x256xf32>
    %60 = arith.addf %57, %59 : vector<1x256xf32>
    %c254_i32_25 = arith.constant 254 : i32
    %61 = tpu.dynamic_rotate %56 by %c254_i32_25 dim 1 : vector<1x256xf32>, i32 -> vector<1x256xf32>
    %62 = arith.mulf %8, %61 : vector<1x256xf32>
    %63 = arith.addf %60, %62 : vector<1x256xf32>
    %c1_26 = arith.constant 1 : index
    %c0_27 = arith.constant 0 : index
    %c0_28 = arith.constant 0 : index
    %64 = vector.load %arg8[%c1_26, %c0_27, %c0_28] : memref<2x1x256xf32, #tpu.memory_space<vmem>>, vector<1x1x256xf32>
    %65 = vector.shape_cast %64 : vector<1x1x256xf32> to vector<1x256xf32>
    %66 = vector.shape_cast %63 : vector<1x256xf32> to vector<1x1x256xf32>
    tpu.vector_store %arg8[%c1_26, %c0_27, %c0_28], %66 {strides = array<i32>} : memref<2x1x256xf32, #tpu.memory_space<vmem>>, vector<1x1x256xf32>,
    return
  }
  func.func @transform_0(%arg0: i32) -> (i32, i32, i32) {
    %c0_i32 = arith.constant 0 : i32
    %c0_i32_0 = arith.constant 0 : i32
    %c0_i32_1 = arith.constant 0 : i32
    return %arg0, %c0_i32, %c0_i32_0 : i32, i32, i32
  }
  func.func @transform_1(%arg0: i32) -> (i32, i32) {
    %c0_i32 = arith.constant 0 : i32
    %c0_i32_0 = arith.constant 0 : i32
    %c0_i32_1 = arith.constant 0 : i32
    return %c0_i32, %c0_i32_0 : i32, i32
  }
  func.func @transform_2(%arg0: i32) -> (i32, i32) {
    %c0_i32 = arith.constant 0 : i32
    %c0_i32_0 = arith.constant 0 : i32
    %c0_i32_1 = arith.constant 0 : i32
    return %c0_i32, %c0_i32_0 : i32, i32
  }
  func.func @transform_3(%arg0: i32) -> (i32, i32) {
    %c0_i32 = arith.constant 0 : i32
    %c0_i32_0 = arith.constant 0 : i32
    %c0_i32_1 = arith.constant 0 : i32
    return %c0_i32, %c0_i32_0 : i32, i32
  }
  func.func @transform_4(%arg0: i32) -> (i32, i32) {
    %c0_i32 = arith.constant 0 : i32
    %c0_i32_0 = arith.constant 0 : i32
    %c0_i32_1 = arith.constant 0 : i32
    return %c0_i32, %c0_i32_0 : i32, i32
  }
  func.func @transform_5(%arg0: i32) -> (i32, i32) {
    %c0_i32 = arith.constant 0 : i32
    %c0_i32_0 = arith.constant 0 : i32
    %c0_i32_1 = arith.constant 0 : i32
    return %c0_i32, %c0_i32_0 : i32, i32
  }
  func.func @transform_6(%arg0: i32) -> (i32, i32) {
    %c0_i32 = arith.constant 0 : i32
    %c0_i32_0 = arith.constant 0 : i32
    %c0_i32_1 = arith.constant 0 : i32
    return %c0_i32, %c0_i32_0 : i32, i32
  }
  func.func @transform_7(%arg0: i32) -> (i32, i32, i32) {
    %c0_i32 = arith.constant 0 : i32
    %c0_i32_0 = arith.constant 0 : i32
    %c0_i32_1 = arith.constant 0 : i32
    return %arg0, %c0_i32, %c0_i32_0 : i32, i32, i32
  }
}

</mosaic_0001>

<llo_original>
// kernel: tpu_custom_call.1
$region0: #{tpu_custom_call.1}
  #allocation0 [shape = 'u32[]', space=smem, size = 0x4, offset = 0x4, fixed_abs, tag = 'smem constant byte address 0x4 - core index']
  #allocation1 [shape = 'u32[144,128]{1,0:T(1,128)}', space=vmem, size = 0x12000, scoped, tag = 'internal scratch']
  #allocation2 [shape = 'f32[1,1]{1,0:T(1,128)S(1)}', space=vmem, size = 0x200, scoped, tag = 'scoped memory for tpu_custom_call.1']
  #allocation3 [shape = 'f32[1,1]{1,0:T(1,128)S(1)}', space=vmem, size = 0x200, scoped, tag = 'scoped memory for tpu_custom_call.1']
  #allocation4 [shape = 'f32[1,1]{1,0:T(1,128)S(1)}', space=vmem, size = 0x200, scoped, tag = 'scoped memory for tpu_custom_call.1']
  %s0 = inlined_call_operand.vmem [shape: f32[4,3,256], index: 0, kind: input, shape index: {}]
  %s1 = inlined_call_operand.vmem [shape: f32[1,3], index: 1, kind: input, shape index: {}]
  %s2 = inlined_call_operand.<no memory space> [shape: f32[1,1], index: 2, kind: input, shape index: {}]
  %s3 = inlined_call_operand.<no memory space> [shape: f32[1,1], index: 3, kind: input, shape index: {}]
  %s4 = inlined_call_operand.<no memory space> [shape: f32[1,1], index: 4, kind: input, shape index: {}]
  %s5 = inlined_call_operand.vmem [shape: f32[2,256], index: 5, kind: input, shape index: {}]
  %s6 = inlined_call_operand.vmem [shape: f32[3,256], index: 6, kind: input, shape index: {}]
  %s7 = inlined_call_operand.hbm [shape: f32[4,1,256], index: 7, kind: output, shape index: {}]
  %s8 = sld [smem:[#allocation0]]
  $region61: #{tpu_custom_call.1} parent=0
    _
  %s10 = ssub.s32 1, %s8
  %s11 = scalar_select 0, %s10, %s8
  %v12 = vstv %s2
  %13 = vst [vmem:[#allocation2] sm:$0x1] %v12
  %v14 = vstv %s3
  %15 = vst [vmem:[#allocation3] sm:$0x1] %v14
  %v16 = vstv %s4
  %17 = vst [vmem:[#allocation4] sm:$0x1] %v16
  $region1: #{tpu_custom_call.1} parent=0
    #allocation5 [shape = 'u8[4096]{0}', space=vmem, size = 0x1000, scoped, tag = 'output window, operand 0']
    #allocation6 [shape = 's32[2]{0}', space=sflag, size = 0x8, scoped, tag = 'scoped memory for tpu_custom_call.1']
    %18 = vsyncpa [#allocation6], 0
    %s19 = scalar_lea.sflag [#allocation6], 1
    %20 = vsyncpa %s19, 0
    loop: start=0, step=1, limit=4
    $region2: #{tpu_custom_call.1} parent=1 // loop_pre_header
      _
    $region3: #{tpu_custom_call.1} parent=1 // loop_header
      %s22 = sphi 0, %s26
      %p23 = scmp.ge.s32.totalorder %s22, 4
      %s32 = sphi 0, %s34
      %s35 = sphi 0, %s32
      %s36 = sphi 0, %s35
      %s52 = sphi 0, %s36
      %s56 = sphi 0, %s56
      %s58 = sphi 0, %s56
      %s59 = sphi 0, %s58
      %s73 = sphi 0, %s59
      %s77 = sphi 0, %s77
      %s79 = sphi 0, %s77
      %s80 = sphi 0, %s79
      %s94 = sphi 0, %s80
      %s98 = sphi 0, %s98
      %s100 = sphi 0, %s98
      %s101 = sphi 0, %s100
      %s115 = sphi 0, %s101
      %s119 = sphi 0, %s119
      %s121 = sphi 0, %s119
      %s122 = sphi 0, %s121
      %s136 = sphi 0, %s122
      %s140 = sphi 0, %s140
      %s142 = sphi 0, %s140
      %s143 = sphi 0, %s142
      %s157 = sphi 0, %s143
      %s161 = sphi 0, %s161
      %s163 = sphi 0, %s161
      %s164 = sphi 0, %s163
      %s178 = sphi 0, %s164
      %s184 = sphi 0, %s186
      %s187 = sphi 0, %s184
      %s188 = sphi 0, %s187
      %s204 = sphi 0, %s188
    $region4: #{tpu_custom_call.1} parent=1 // loop_header_branch
      %25 = sbr.rel (%p23) target = $region8
    $region5: #{tpu_custom_call.1} parent=1 // loop_body
      %s27 = ssub.s32 %s22, 1
      %s28 = ssub.s32 %s22, 2
      %s29 = sadd.s32 %s22, 1
      %s30 = ssub.s32 %s22, %s29
      %p31 = scmp.eq.s32.totalorder %s30, 0
      %s33 = sadd.s32 %s32, 1
      %s34 = scalar_select %p31, %s32, %s33
      %p37 = pneg %p31
      %p38 = scmp.eq.s32.totalorder %s22, 1
      %p39 = por %p37, %p38
      %p40 = scmp.ne.s32.totalorder %s32, %s35
      %p41 = scmp.eq.s32.totalorder %s22, 0
      %p42 = por %p40, %p41
      %p43 = scmp.ne.s32.totalorder %s32, %s35
      %p44 = scmp.eq.s32.totalorder %s27, 1
      %p45 = por %p43, %p44
      %p46 = scmp.ne.s32.totalorder %s35, %s36
      %p47 = scmp.eq.s32.totalorder %s27, 0
      %p48 = por %p46, %p47
      %p49 = scmp.ne.s32.totalorder %s35, %s36
      %p50 = scmp.eq.s32.totalorder %s28, 1
      %p51 = por %p49, %p50
      %p53 = scmp.ne.s32.totalorder %s36, %s52
      %p54 = scmp.eq.s32.totalorder %s28, 0
      %p55 = por %p53, %p54
      %s57 = sadd.s32 %s56, 1
      %p60 = scmp.eq.s32.totalorder %s22, 1
      %p61 = scmp.ne.s32.totalorder %s56, %s58
      %p62 = scmp.eq.s32.totalorder %s22, 0
      %p63 = por %p61, %p62
      %p64 = scmp.ne.s32.totalorder %s56, %s58
      %p65 = scmp.eq.s32.totalorder %s27, 1
      %p66 = por %p64, %p65
      %p67 = scmp.ne.s32.totalorder %s58, %s59
      %p68 = scmp.eq.s32.totalorder %s27, 0
      %p69 = por %p67, %p68
      %p70 = scmp.ne.s32.totalorder %s58, %s59
      %p71 = scmp.eq.s32.totalorder %s28, 1
      %p72 = por %p70, %p71
      %p74 = scmp.ne.s32.totalorder %s59, %s73
      %p75 = scmp.eq.s32.totalorder %s28, 0
      %p76 = por %p74, %p75
      %s78 = sadd.s32 %s77, 1
      %p81 = scmp.eq.s32.totalorder %s22, 1
      %p82 = scmp.ne.s32.totalorder %s77, %s79
      %p83 = scmp.eq.s32.totalorder %s22, 0
      %p84 = por %p82, %p83
      %p85 = scmp.ne.s32.totalorder %s77, %s79
      %p86 = scmp.eq.s32.totalorder %s27, 1
      %p87 = por %p85, %p86
      %p88 = scmp.ne.s32.totalorder %s79, %s80
      %p89 = scmp.eq.s32.totalorder %s27, 0
      %p90 = por %p88, %p89
      %p91 = scmp.ne.s32.totalorder %s79, %s80
      %p92 = scmp.eq.s32.totalorder %s28, 1
      %p93 = por %p91, %p92
      %p95 = scmp.ne.s32.totalorder %s80, %s94
      %p96 = scmp.eq.s32.totalorder %s28, 0
      %p97 = por %p95, %p96
      %s99 = sadd.s32 %s98, 1
      %p102 = scmp.eq.s32.totalorder %s22, 1
      %p103 = scmp.ne.s32.totalorder %s98, %s100
      %p104 = scmp.eq.s32.totalorder %s22, 0
      %p105 = por %p103, %p104
      %p106 = scmp.ne.s32.totalorder %s98, %s100
      %p107 = scmp.eq.s32.totalorder %s27, 1
      %p108 = por %p106, %p107
      %p109 = scmp.ne.s32.totalorder %s100, %s101
      %p110 = scmp.eq.s32.totalorder %s27, 0
      %p111 = por %p109, %p110
      %p112 = scmp.ne.s32.totalorder %s100, %s101
      %p113 = scmp.eq.s32.totalorder %s28, 1
      %p114 = por %p112, %p113
      %p116 = scmp.ne.s32.totalorder %s101, %s115
      %p117 = scmp.eq.s32.totalorder %s28, 0
      %p118 = por %p116, %p117
      %s120 = sadd.s32 %s119, 1
      %p123 = scmp.eq.s32.totalorder %s22, 1
      %p124 = scmp.ne.s32.totalorder %s119, %s121
      %p125 = scmp.eq.s32.totalorder %s22, 0
      %p126 = por %p124, %p125
      %p127 = scmp.ne.s32.totalorder %s119, %s121
      %p128 = scmp.eq.s32.totalorder %s27, 1
      %p129 = por %p127, %p128
      %p130 = scmp.ne.s32.totalorder %s121, %s122
      %p131 = scmp.eq.s32.totalorder %s27, 0
      %p132 = por %p130, %p131
      %p133 = scmp.ne.s32.totalorder %s121, %s122
      %p134 = scmp.eq.s32.totalorder %s28, 1
      %p135 = por %p133, %p134
      %p137 = scmp.ne.s32.totalorder %s122, %s136
      %p138 = scmp.eq.s32.totalorder %s28, 0
      %p139 = por %p137, %p138
      %s141 = sadd.s32 %s140, 1
      %p144 = scmp.eq.s32.totalorder %s22, 1
      %p145 = scmp.ne.s32.totalorder %s140, %s142
      %p146 = scmp.eq.s32.totalorder %s22, 0
      %p147 = por %p145, %p146
      %p148 = scmp.ne.s32.totalorder %s140, %s142
      %p149 = scmp.eq.s32.totalorder %s27, 1
      %p150 = por %p148, %p149
      %p151 = scmp.ne.s32.totalorder %s142, %s143
      %p152 = scmp.eq.s32.totalorder %s27, 0
      %p153 = por %p151, %p152
      %p154 = scmp.ne.s32.totalorder %s142, %s143
      %p155 = scmp.eq.s32.totalorder %s28, 1
      %p156 = por %p154, %p155
      %p158 = scmp.ne.s32.totalorder %s143, %s157
      %p159 = scmp.eq.s32.totalorder %s28, 0
      %p160 = por %p158, %p159
      %s162 = sadd.s32 %s161, 1
      %p165 = scmp.eq.s32.totalorder %s22, 1
      %p166 = scmp.ne.s32.totalorder %s161, %s163
      %p167 = scmp.eq.s32.totalorder %s22, 0
      %p168 = por %p166, %p167
      %p169 = scmp.ne.s32.totalorder %s161, %s163
      %p170 = scmp.eq.s32.totalorder %s27, 1
      %p171 = por %p169, %p170
      %p172 = scmp.ne.s32.totalorder %s163, %s164
      %p173 = scmp.eq.s32.totalorder %s27, 0
      %p174 = por %p172, %p173
      %p175 = scmp.ne.s32.totalorder %s163, %s164
      %p176 = scmp.eq.s32.totalorder %s28, 1
      %p177 = por %p175, %p176
      %p179 = scmp.ne.s32.totalorder %s164, %s178
      %p180 = scmp.eq.s32.totalorder %s28, 0
      %p181 = por %p179, %p180
      %s182 = ssub.s32 %s22, %s29
      %p183 = scmp.eq.s32.totalorder %s182, 0
      %s185 = sadd.s32 %s184, 1
      %s186 = scalar_select %p183, %s184, %s185
      %p189 = pneg %p183
      %p190 = scmp.eq.s32.totalorder %s22, 1
      %p191 = por %p189, %p190
      %p192 = scmp.ne.s32.totalorder %s184, %s187
      %p193 = scmp.eq.s32.totalorder %s22, 0
      %p194 = por %p192, %p193
      %p195 = scmp.ne.s32.totalorder %s184, %s187
      %p196 = scmp.eq.s32.totalorder %s27, 1
      %p197 = por %p195, %p196
      %p198 = scmp.ne.s32.totalorder %s187, %s188
      %p199 = scmp.eq.s32.totalorder %s27, 0
      %p200 = por %p198, %p199
      %p201 = scmp.ne.s32.totalorder %s187, %s188
      %p202 = scmp.eq.s32.totalorder %s28, 1
      %p203 = por %p201, %p202
      %p205 = scmp.ne.s32.totalorder %s188, %s204
      %p206 = scmp.eq.s32.totalorder %s28, 0
      %p207 = por %p205, %p206
      %p208 = scmp.le.s32.totalorder 1, %s22
      %p209 = scmp.lt.s32.totalorder %s22, 3
      %p210 = pnand %p208, %p209
      %p211 = pneg %p210
      // Predicated region
      $region9: #{tpu_custom_call.1} parent=5 // pred_check
        _
      $region10: #{tpu_custom_call.1} parent=5 // pred_check_branch
        %213 = sbr.rel (%p210) target = $region12
      $region11: #{tpu_custom_call.1} parent=5 // pred_region
        %s214 = ssub.s32 %s22, 1
        // Predicated region
        $region13: #{tpu_custom_call.1} parent=11 // pred_check
          %p215 = pneg %p69
        $region14: #{tpu_custom_call.1} parent=11 // pred_check_branch
          %217 = sbr.rel (%p215) target = $region16
        $region15: #{tpu_custom_call.1} parent=11 // pred_region
          _
        $region16: #{tpu_custom_call.1} parent=11 // pred_fallthru
          _
        // Predicated region
        $region17: #{tpu_custom_call.1} parent=11 // pred_check
          %p218 = pneg %p90
        $region18: #{tpu_custom_call.1} parent=11 // pred_check_branch
          %220 = sbr.rel (%p218) target = $region20
        $region19: #{tpu_custom_call.1} parent=11 // pred_region
          _
        $region20: #{tpu_custom_call.1} parent=11 // pred_fallthru
          _
        // Predicated region
        $region21: #{tpu_custom_call.1} parent=11 // pred_check
          %p221 = pneg %p111
        $region22: #{tpu_custom_call.1} parent=11 // pred_check_branch
          %223 = sbr.rel (%p221) target = $region24
        $region23: #{tpu_custom_call.1} parent=11 // pred_region
          _
        $region24: #{tpu_custom_call.1} parent=11 // pred_fallthru
          _
        // Predicated region
        $region25: #{tpu_custom_call.1} parent=11 // pred_check
          %p224 = pneg %p132
        $region26: #{tpu_custom_call.1} parent=11 // pred_check_branch
          %226 = sbr.rel (%p224) target = $region28
        $region27: #{tpu_custom_call.1} parent=11 // pred_region
          _
        $region28: #{tpu_custom_call.1} parent=11 // pred_fallthru
          _
        // Predicated region
        $region29: #{tpu_custom_call.1} parent=11 // pred_check
          %p227 = pneg %p153
        $region30: #{tpu_custom_call.1} parent=11 // pred_check_branch
          %229 = sbr.rel (%p227) target = $region32
        $region31: #{tpu_custom_call.1} parent=11 // pred_region
          _
        $region32: #{tpu_custom_call.1} parent=11 // pred_fallthru
          _
        // Predicated region
        $region33: #{tpu_custom_call.1} parent=11 // pred_check
          %p230 = pneg %p174
        $region34: #{tpu_custom_call.1} parent=11 // pred_check_branch
          %232 = sbr.rel (%p230) target = $region36
        $region35: #{tpu_custom_call.1} parent=11 // pred_region
          _
        $region36: #{tpu_custom_call.1} parent=11 // pred_fallthru
          _
      $region12: #{tpu_custom_call.1} parent=5 // pred_fallthru
        _
      %p233 = scmp.lt.s32.totalorder %s22, 2
      // Predicated region
      $region37: #{tpu_custom_call.1} parent=5 // pred_check
        %p234 = pneg %p233
      $region38: #{tpu_custom_call.1} parent=5 // pred_check_branch
        %236 = sbr.rel (%p234) target = $region40
      $region39: #{tpu_custom_call.1} parent=5 // pred_region
        // Predicated region
        $region41: #{tpu_custom_call.1} parent=39 // pred_check
          %p237 = pneg %p42
        $region42: #{tpu_custom_call.1} parent=39 // pred_check_branch
          %239 = sbr.rel (%p237) target = $region44
        $region43: #{tpu_custom_call.1} parent=39 // pred_region
          %s240 = smul.u32 2, %s22
          %p241 = scmp.lt.s32.totalorder %s240, 3
          %s242 = scalar_select %p241, %s240, 3
          %s243 = smul.addr %s242, 2
          %s244 = smul.addr %s243, 4
          %s245 = scalar_lea.vmem %s0, %s244
          %s246 = smul.u32 2, %s22
        $region44: #{tpu_custom_call.1} parent=39 // pred_fallthru
          _
      $region40: #{tpu_custom_call.1} parent=5 // pred_fallthru
        _
      %p247 = scmp.le.s32.totalorder 1, %s22
      %p248 = scmp.lt.s32.totalorder %s22, 3
      %p249 = pnand %p247, %p248
      %p250 = pneg %p249
      // Predicated region
      $region45: #{tpu_custom_call.1} parent=5 // pred_check
        _
      $region46: #{tpu_custom_call.1} parent=5 // pred_check_branch
        %252 = sbr.rel (%p249) target = $region48
      $region47: #{tpu_custom_call.1} parent=5 // pred_region
        %s253 = ssub.s32 %s22, 1
        %s254 = smul.u32 2, %s27
        %p255 = scmp.lt.s32.totalorder %s254, 3
        %s256 = scalar_select %p255, %s254, 3
        %s257 = smul.addr %s256, 2
        %s258 = smul.addr %s257, 4
        %s259 = scalar_lea.vmem %s0, %s258
        %p260 = pneg %p48
        %p261 = pneg %p45
        %p262 = pneg %p69
        %p263 = pneg %p66
        %p264 = pneg %p90
        %p265 = pneg %p87
        %p266 = pneg %p111
        %p267 = pneg %p108
        %p268 = pneg %p132
        %p269 = pneg %p129
        %p270 = pneg %p153
        %p271 = pneg %p150
        %p272 = pneg %p174
        %p273 = pneg %p171
        %p274 = pneg %p200
        %p275 = pneg %p197
        %s276 = sand.u32 %s187, 1
        %s277 = scalar_lea.sflag [#allocation6], %s276
        %s278 = sand.u32 %s187, 1
        %s279 = smul.addr %s278, 4
        %s280 = scalar_lea.vmem [#allocation5], %s279
        %s281 = smul.u32 2, %s27
        %p282 = scmp.lt.s32.totalorder %s281, 3
        %s283 = scalar_select %p282, %s281, 3
        %s284 = smul.addr %s283, 2
        %s285 = smul.addr %s284, 4
        %s286 = scalar_lea.vmem %s0, %s285
        %s287 = smul.u32 2, %s27
        %s288 = smul.u32 2, %s27
        %v289 = vld [vmem:[%s1] sm:$0x1]
        %v290 = vld [vmem:[#allocation2] sm:$0x1]
        %v291 = vld [vmem:[#allocation3] sm:$0x1]
        %v292 = vld [vmem:[#allocation4] sm:$0x1]
        %v293 = vld [vmem:[%s5] sm:$0xf]
        %v294 = vld [vmem:[%s6] sm:$0x77]
        %v295 = vld [vmem:[%s286] sm:$0x77]
        %v297 = vcombine.high %v295, %v295
        %vm298 = vcmask 23552
        %v300 = vsel %vm298, %v289, 0
        %vm302 = vcmask 1042432
        %v303 = vsel %vm302, %v295, 0
        %v305 = vsel %vm302, %v297, 0
        %307 = vmatprep.subr.mxu0 %v305
        %308 = vmatpush1.msra.mxu0 %v303
        %309 = vmatprep.subr.mxu0 0.0
        %310 = vmatpush1.msra.mxu0 0.0
        %311 = vmatprep.subr.mxu0 0.0
        %312 = vmatpush1.msra.mxu0 0.0
        %313 = vmatprep.subr.mxu0 0.0
        %314 = vmatpush1.msra.mxu0 0.0
        %315 = vmatprep.subr.mxu0 0.0
        %316 = vmatpush1.msra.mxu0 0.0
        %317 = vmatprep.subr.mxu0 0.0
        %318 = vmatpush1.msra.mxu0 0.0
        %319 = vmatprep.subr.mxu0 0.0
        %320 = vmatpush1.msra.mxu0 0.0
        %321 = vmatprep.subr.mxu0 0.0
        %322 = vmatpush1.msra.mxu0 0.0
        %323 = vmatprep.subr.mxu0 0.0
        %324 = vmatpush1.msra.mxu0 0.0
        %325 = vmatprep.subr.mxu0 0.0
        %326 = vmatpush1.msra.mxu0 0.0
        %327 = vmatprep.subr.mxu0 0.0
        %328 = vmatpush1.msra.mxu0 0.0
        %329 = vmatprep.subr.mxu0 0.0
        %330 = vmatpush1.msra.mxu0 0.0
        %331 = vmatprep.subr.mxu0 0.0
        %332 = vmatpush1.msra.mxu0 0.0
        %333 = vmatprep.subr.mxu0 0.0
        %334 = vmatpush1.msra.mxu0 0.0
        %335 = vmatprep.subr.mxu0 0.0
        %336 = vmatpush1.msra.mxu0 0.0
        %337 = vmatprep.subr.mxu0 0.0
        %338 = vmatpush1.msra.mxu0 0.0
        %339 = vmatprep.subr.mxu0 0.0
        %340 = vmatpush1.msra.mxu0 0.0
        %341 = vmatprep.subr.mxu0 0.0
        %342 = vmatpush1.msra.mxu0 0.0
        %343 = vmatprep.subr.mxu0 0.0
        %344 = vmatpush1.msra.mxu0 0.0
        %345 = vmatprep.subr.mxu0 0.0
        %346 = vmatpush1.msra.mxu0 0.0
        %347 = vmatprep.subr.mxu0 0.0
        %348 = vmatpush1.msra.mxu0 0.0
        %349 = vmatprep.subr.mxu0 0.0
        %350 = vmatpush1.msra.mxu0 0.0
        %351 = vmatprep.subr.mxu0 0.0
        %352 = vmatpush1.msra.mxu0 0.0
        %353 = vmatprep.subr.mxu0 0.0
        %354 = vmatpush1.msra.mxu0 0.0
        %355 = vmatprep.subr.mxu0 0.0
        %356 = vmatpush1.msra.mxu0 0.0
        %357 = vmatprep.subr.mxu0 0.0
        %358 = vmatpush1.msra.mxu0 0.0
        %359 = vmatprep.subr.mxu0 0.0
        %360 = vmatpush1.msra.mxu0 0.0
        %361 = vmatprep.subr.mxu0 0.0
        %362 = vmatpush1.msra.mxu0 0.0
        %363 = vmatprep.subr.mxu0 0.0
        %364 = vmatpush1.msra.mxu0 0.0
        %365 = vmatprep.subr.mxu0 0.0
        %366 = vmatpush1.msra.mxu0 0.0
        %367 = vmatprep.subr.mxu0 0.0
        %368 = vmatpush1.msra.mxu0 0.0
        %369 = vmatprep.subr.mxu0 0.0
        %370 = vmatpush1.msra.mxu0 0.0
        %371 = vmatprep.mubr.f32.mxu0 0.0
        %372 = vmatmul.mubr.f32.gmra.mrb[0].mxu0 %v300
        %v373 = vpop.f32.mrb[0].mxu0
        %v374 = vadd.f32 0.0, %v373
        %v375 = vpop.f32.mrb[0].mxu0
        %v376 = vadd.f32 0.0, %v375
        %377 = vdwg.mxu0
        %378 = vrot.lane.b32.xlu0 %v374, 1
        %v379 = vpop.permute.xlu0 %378
        %380 = vrot.lane.b32.xlu0 %v376, 1
        %v381 = vpop.permute.xlu0 %380
        %v382 = vlaneseq
        %v383 = vand.u32 %v382, 127
        %vm384 = vcmp.lt.s32.totalorder %v383, 1
        %v385 = vsel %vm384, %v379, %v381
        %v386 = vsel %vm384, %v381, %v379
        %v389 = vcombine.low %v386, %v385
        %v391 = vunpack.c.l.s4 1983009808
        %v392 = vunpack.c.0.s8 %v391
        %v393 = vlaneseq
        %v394 = vshrl.u32 %v393, 7
        %v395 = vsub.s32 %v392, %v394
        %v396 = vrot.slane %v389, %v395
        %v398 = vmul.f32 %v293, %v396
        %v400 = vlaneseq
        %v401 = vshrl.u32 %v400, 7
        %v402 = vsub.s32 0, %v401
        %v403 = vrot.slane %v398, %v402
        %v404 = vlaneseq
        %v405 = vshrl.u32 %v404, 7
        %v406 = vsub.s32 2, %v405
        %v407 = vrot.slane %v398, %v406
        %v410 = vadd.f32 %v374, %v403
        %v411 = vadd.f32 %v376, %v407
        %412 = vrot.lane.b32.xlu0 %v374, 127
        %v413 = vpop.permute.xlu0 %412
        %414 = vrot.lane.b32.xlu0 %v376, 127
        %v415 = vpop.permute.xlu0 %414
        %vm416 = vcmp.lt.s32.totalorder %v383, 127
        %v417 = vsel %vm416, %v413, %v415
        %v418 = vsel %vm416, %v415, %v413
        %v421 = vcombine.low %v417, %v418
        %v423 = vunpack.c.l.s4 1983009808
        %v424 = vunpack.c.0.s8 %v423
        %v425 = vlaneseq
        %v426 = vshrl.u32 %v425, 7
        %v427 = vsub.s32 %v424, %v426
        %v428 = vrot.slane %v421, %v427
        %v429 = vrot.slane %v428, 7
        %v431 = vmul.f32 %v293, %v429
        %v433 = vlaneseq
        %v434 = vshrl.u32 %v433, 7
        %v435 = vsub.s32 1, %v434
        %v436 = vrot.slane %v431, %v435
        %v437 = vlaneseq
        %v438 = vshrl.u32 %v437, 7
        %v439 = vsub.s32 3, %v438
        %v440 = vrot.slane %v431, %v439
        %v443 = vadd.f32 %v410, %v436
        %v444 = vadd.f32 %v411, %v440
        %446 = vset.pattern.permute.xlu0 0
        %447 = vperm.xlu0 %446, %v290
        %v448 = vpop.permute.xlu0 %447
        %v450 = vlaneseq
        %v451 = vshrl.u32 %v450, 7
        %v452 = vsub.s32 0, %v451
        %v453 = vrot.slane %v448, %v452
        %v454 = vadd.f32 %v443, %v453
        %v455 = vadd.f32 %v444, %v453
        %v456 = vmax.f32 %v454, 0.0
        %v457 = vmax.f32 %v455, 0.0
        %459 = vset.pattern.permute.xlu0 0
        %460 = vperm.xlu0 %459, %v291
        %v461 = vpop.permute.xlu0 %460
        %v463 = vlaneseq
        %v464 = vshrl.u32 %v463, 7
        %v465 = vsub.s32 0, %v464
        %v466 = vrot.slane %v461, %v465
        %v467 = vmul.f32 %v456, %v466
        %v468 = vmul.f32 %v457, %v466
        %470 = vset.pattern.permute.xlu0 0
        %471 = vperm.xlu0 %470, %v292
        %v472 = vpop.permute.xlu0 %471
        %v474 = vlaneseq
        %v475 = vshrl.u32 %v474, 7
        %v476 = vsub.s32 0, %v475
        %v477 = vrot.slane %v472, %v476
        %v478 = vadd.f32 %v467, %v477
        %v479 = vadd.f32 %v468, %v477
        %v482 = vcombine.low %v478, %v479
        %v483 = vrot.slane %v482, 7
        %v485 = vmul.f32 %v294, %v483
        %486 = vrot.lane.b32.xlu0 %v478, 2
        %v487 = vpop.permute.xlu0 %486
        %488 = vrot.lane.b32.xlu0 %v479, 2
        %v489 = vpop.permute.xlu0 %488
        %vm490 = vcmp.lt.s32.totalorder %v383, 2
        %v491 = vsel %vm490, %v487, %v489
        %v492 = vsel %vm490, %v489, %v487
        %v495 = vcombine.low %v492, %v491
        %v497 = vmul.f32 %v294, %v495
        %v499 = vrot.slane %v497, 7
        %v501 = vadd.f32 %v485, %v499
        %502 = vrot.lane.b32.xlu0 %v478, 126
        %v503 = vpop.permute.xlu0 %502
        %504 = vrot.lane.b32.xlu0 %v479, 126
        %v505 = vpop.permute.xlu0 %504
        %vm506 = vcmp.lt.s32.totalorder %v383, 126
        %v507 = vsel %vm506, %v503, %v505
        %v508 = vsel %vm506, %v505, %v503
        %v511 = vcombine.low %v507, %v508
        %v512 = vrot.slane %v511, 6
        %v514 = vmul.f32 %v294, %v512
        %v516 = vrot.slane %v514, 5
        %v517 = vrot.slane %v516, 4
        %v519 = vadd.f32 %v501, %v517
        %v522 = vunpack.c.l.s4 1966171168
        %v523 = vunpack.c.0.s8 %v522
        %v524 = vlaneseq
        %v525 = vshrl.u32 %v524, 7
        %v526 = vsub.s32 %v523, %v525
        %v527 = vrot.slane %v519, %v526
        %v528 = vcombine.high %v527, %v527
        %v530 = vunpack.c.l.s4 1966171168
        %v531 = vunpack.c.0.s8 %v530
        %v532 = vlaneseq
        %v533 = vshrl.u32 %v532, 7
        %v534 = vsub.s32 %v531, %v533
        %v535 = vrot.slane %v528, %v534
        %v537 = vlaneseq
        %vm538 = vcmp.ge.s32.totalorder %v537, 0
        %vm539 = vcmp.lt.s32.totalorder %v537, 256
        %vm540 = vmand %vm538, %vm539
        %541 = vst.msk [vmem:[%s280] sm:$0x3] %vm540, %v535
        %s542 = scalar_lea.vmem %s286, 8
        %v543 = vld [vmem:[%s542] sm:$0x77]
        %v545 = vcombine.high %v543, %v543
        %v546 = vsel %vm302, %v543, 0
        %v548 = vsel %vm302, %v545, 0
        %550 = vmatprep.subr.mxu0 %v548
        %551 = vmatpush1.msra.mxu0 %v546
        %552 = vmatprep.subr.mxu0 0.0
        %553 = vmatpush1.msra.mxu0 0.0
        %554 = vmatprep.subr.mxu0 0.0
        %555 = vmatpush1.msra.mxu0 0.0
        %556 = vmatprep.subr.mxu0 0.0
        %557 = vmatpush1.msra.mxu0 0.0
        %558 = vmatprep.subr.mxu0 0.0
        %559 = vmatpush1.msra.mxu0 0.0
        %560 = vmatprep.subr.mxu0 0.0
        %561 = vmatpush1.msra.mxu0 0.0
        %562 = vmatprep.subr.mxu0 0.0
        %563 = vmatpush1.msra.mxu0 0.0
        %564 = vmatprep.subr.mxu0 0.0
        %565 = vmatpush1.msra.mxu0 0.0
        %566 = vmatprep.subr.mxu0 0.0
        %567 = vmatpush1.msra.mxu0 0.0
        %568 = vmatprep.subr.mxu0 0.0
        %569 = vmatpush1.msra.mxu0 0.0
        %570 = vmatprep.subr.mxu0 0.0
        %571 = vmatpush1.msra.mxu0 0.0
        %572 = vmatprep.subr.mxu0 0.0
        %573 = vmatpush1.msra.mxu0 0.0
        %574 = vmatprep.subr.mxu0 0.0
        %575 = vmatpush1.msra.mxu0 0.0
        %576 = vmatprep.subr.mxu0 0.0
        %577 = vmatpush1.msra.mxu0 0.0
        %578 = vmatprep.subr.mxu0 0.0
        %579 = vmatpush1.msra.mxu0 0.0
        %580 = vmatprep.subr.mxu0 0.0
        %581 = vmatpush1.msra.mxu0 0.0
        %582 = vmatprep.subr.mxu0 0.0
        %583 = vmatpush1.msra.mxu0 0.0
        %584 = vmatprep.subr.mxu0 0.0
        %585 = vmatpush1.msra.mxu0 0.0
        %586 = vmatprep.subr.mxu0 0.0
        %587 = vmatpush1.msra.mxu0 0.0
        %588 = vmatprep.subr.mxu0 0.0
        %589 = vmatpush1.msra.mxu0 0.0
        %590 = vmatprep.subr.mxu0 0.0
        %591 = vmatpush1.msra.mxu0 0.0
        %592 = vmatprep.subr.mxu0 0.0
        %593 = vmatpush1.msra.mxu0 0.0
        %594 = vmatprep.subr.mxu0 0.0
        %595 = vmatpush1.msra.mxu0 0.0
        %596 = vmatprep.subr.mxu0 0.0
        %597 = vmatpush1.msra.mxu0 0.0
        %598 = vmatprep.subr.mxu0 0.0
        %599 = vmatpush1.msra.mxu0 0.0
        %600 = vmatprep.subr.mxu0 0.0
        %601 = vmatpush1.msra.mxu0 0.0
        %602 = vmatprep.subr.mxu0 0.0
        %603 = vmatpush1.msra.mxu0 0.0
        %604 = vmatprep.subr.mxu0 0.0
        %605 = vmatpush1.msra.mxu0 0.0
        %606 = vmatprep.subr.mxu0 0.0
        %607 = vmatpush1.msra.mxu0 0.0
        %608 = vmatprep.subr.mxu0 0.0
        %609 = vmatpush1.msra.mxu0 0.0
        %610 = vmatprep.subr.mxu0 0.0
        %611 = vmatpush1.msra.mxu0 0.0
        %612 = vmatprep.subr.mxu0 0.0
        %613 = vmatpush1.msra.mxu0 0.0
        %614 = vmatprep.mubr.f32.mxu0 0.0
        %615 = vmatmul.mubr.f32.gmra.mrb[0].mxu0 %v300
        %v616 = vpop.f32.mrb[0].mxu0
        %v617 = vadd.f32 0.0, %v616
        %v618 = vpop.f32.mrb[0].mxu0
        %v619 = vadd.f32 0.0, %v618
        %620 = vdwg.mxu0
        %621 = vrot.lane.b32.xlu0 %v617, 1
        %v622 = vpop.permute.xlu0 %621
        %623 = vrot.lane.b32.xlu0 %v619, 1
        %v624 = vpop.permute.xlu0 %623
        %v625 = vsel %vm384, %v622, %v624
        %v626 = vsel %vm384, %v624, %v622
        %v629 = vcombine.low %v626, %v625
        %v631 = vunpack.c.l.s4 1983009808
        %v632 = vunpack.c.0.s8 %v631
        %v633 = vlaneseq
        %v634 = vshrl.u32 %v633, 7
        %v635 = vsub.s32 %v632, %v634
        %v636 = vrot.slane %v629, %v635
        %v638 = vmul.f32 %v293, %v636
        %v640 = vlaneseq
        %v641 = vshrl.u32 %v640, 7
        %v642 = vsub.s32 0, %v641
        %v643 = vrot.slane %v638, %v642
        %v644 = vlaneseq
        %v645 = vshrl.u32 %v644, 7
        %v646 = vsub.s32 2, %v645
        %v647 = vrot.slane %v638, %v646
        %v650 = vadd.f32 %v617, %v643
        %v651 = vadd.f32 %v619, %v647
        %652 = vrot.lane.b32.xlu0 %v617, 127
        %v653 = vpop.permute.xlu0 %652
        %654 = vrot.lane.b32.xlu0 %v619, 127
        %v655 = vpop.permute.xlu0 %654
        %v656 = vsel %vm416, %v653, %v655
        %v657 = vsel %vm416, %v655, %v653
        %v660 = vcombine.low %v656, %v657
        %v662 = vunpack.c.l.s4 1983009808
        %v663 = vunpack.c.0.s8 %v662
        %v664 = vlaneseq
        %v665 = vshrl.u32 %v664, 7
        %v666 = vsub.s32 %v663, %v665
        %v667 = vrot.slane %v660, %v666
        %v668 = vrot.slane %v667, 7
        %v670 = vmul.f32 %v293, %v668
        %v672 = vlaneseq
        %v673 = vshrl.u32 %v672, 7
        %v674 = vsub.s32 1, %v673
        %v675 = vrot.slane %v670, %v674
        %v676 = vlaneseq
        %v677 = vshrl.u32 %v676, 7
        %v678 = vsub.s32 3, %v677
        %v679 = vrot.slane %v670, %v678
        %v682 = vadd.f32 %v650, %v675
        %v683 = vadd.f32 %v651, %v679
        %v684 = vadd.f32 %v682, %v453
        %v685 = vadd.f32 %v683, %v453
        %v686 = vmax.f32 %v684, 0.0
        %v687 = vmax.f32 %v685, 0.0
        %v688 = vmul.f32 %v686, %v466
        %v689 = vmul.f32 %v687, %v466
        %v690 = vadd.f32 %v688, %v477
        %v691 = vadd.f32 %v689, %v477
        %v694 = vcombine.low %v690, %v691
        %v695 = vrot.slane %v694, 7
        %v697 = vmul.f32 %v294, %v695
        %698 = vrot.lane.b32.xlu0 %v690, 2
        %v699 = vpop.permute.xlu0 %698
        %700 = vrot.lane.b32.xlu0 %v691, 2
        %v701 = vpop.permute.xlu0 %700
        %v702 = vsel %vm490, %v699, %v701
        %v703 = vsel %vm490, %v701, %v699
        %v706 = vcombine.low %v703, %v702
        %v708 = vmul.f32 %v294, %v706
        %v710 = vrot.slane %v708, 7
        %v712 = vadd.f32 %v697, %v710
        %713 = vrot.lane.b32.xlu0 %v690, 126
        %v714 = vpop.permute.xlu0 %713
        %715 = vrot.lane.b32.xlu0 %v691, 126
        %v716 = vpop.permute.xlu0 %715
        %v717 = vsel %vm506, %v714, %v716
        %v718 = vsel %vm506, %v716, %v714
        %v721 = vcombine.low %v717, %v718
        %v722 = vrot.slane %v721, 6
        %v724 = vmul.f32 %v294, %v722
        %v726 = vrot.slane %v724, 5
        %v727 = vrot.slane %v726, 4
        %v729 = vadd.f32 %v712, %v727
        %v732 = vunpack.c.l.s4 1966171168
        %v733 = vunpack.c.0.s8 %v732
        %v734 = vlaneseq
        %v735 = vshrl.u32 %v734, 7
        %v736 = vsub.s32 %v733, %v735
        %v737 = vrot.slane %v729, %v736
        %v738 = vcombine.high %v737, %v737
        %v740 = vunpack.c.l.s4 1966171168
        %v741 = vunpack.c.0.s8 %v740
        %v742 = vlaneseq
        %v743 = vshrl.u32 %v742, 7
        %v744 = vsub.s32 %v741, %v743
        %v745 = vrot.slane %v738, %v744
        %s747 = scalar_lea.vmem %s280, 2 [#allocation5]
        %748 = vst.msk [vmem:[%s747] sm:$0x3] %vm540, %v745
        %s749 = sand.u32 %s187, 1
        %s750 = scalar_lea.sflag [#allocation6], %s749
        %s751 = sand.u32 %s187, 1
        %s752 = smul.addr %s751, 4
        %s753 = scalar_lea.vmem [#allocation5], %s752
        // Predicated region
        $region49: #{tpu_custom_call.1} parent=47 // pred_check
          %p754 = pneg %p197
        $region50: #{tpu_custom_call.1} parent=47 // pred_check_branch
          %756 = sbr.rel (%p754) target = $region52
        $region51: #{tpu_custom_call.1} parent=47 // pred_region
          %s757 = smul.u32 2, %s27
          %s759 = ssub.s32 64, 64
          %760 = vsyncadd %s750, %s759
          %s761 = smul.addr %s757, 2
          %s762 = smul.addr %s761, 16
          %s763 = scalar_lea.hbm %s7, %s762
          %s764 = sshll.u32 %s753, 4
          %s765 = int_to_ptr.vmem [resolvable:$true] %s764
          %770 = dma.vmem_to_hbm [thread:$0]  %s765, 64, %s763, %s750, 32, 32, 2
        $region52: #{tpu_custom_call.1} parent=47 // pred_fallthru
          _
      $region48: #{tpu_custom_call.1} parent=5 // pred_fallthru
        _
      %p771 = scmp.le.s32.totalorder 2, %s22
      // Predicated region
      $region53: #{tpu_custom_call.1} parent=5 // pred_check
        %p772 = pneg %p771
      $region54: #{tpu_custom_call.1} parent=5 // pred_check_branch
        %774 = sbr.rel (%p772) target = $region56
      $region55: #{tpu_custom_call.1} parent=5 // pred_region
        %s775 = ssub.s32 %s22, 2
        // Predicated region
        $region57: #{tpu_custom_call.1} parent=55 // pred_check
          %p776 = pneg %p203
        $region58: #{tpu_custom_call.1} parent=55 // pred_check_branch
          %778 = sbr.rel (%p776) target = $region60
        $region59: #{tpu_custom_call.1} parent=55 // pred_region
          %s779 = sand.u32 %s188, 1
          %s780 = scalar_lea.sflag [#allocation6], %s779
          %s781 = sand.u32 %s188, 1
          %s782 = smul.addr %s781, 4
          %s783 = scalar_lea.vmem [#allocation5], %s782
          %784 = dma.done %s780, 64
        $region60: #{tpu_custom_call.1} parent=55 // pred_fallthru
          _
      $region56: #{tpu_custom_call.1} parent=5 // pred_fallthru
        _
    $region6: #{tpu_custom_call.1} parent=1 // loop_footer
      %s26 = sadd.s32 1, %s22
    $region7: #{tpu_custom_call.1} parent=1 // loop_footer_branch
      %21 = sbr.rel target = $region3
    $region8: #{tpu_custom_call.1} parent=1 // loop_exit
      _
    %785 = vsyncpa [#allocation6], 1
    %s786 = scalar_lea.sflag [#allocation6], 1
    %787 = vsyncpa %s786, 1

</llo_original>
